<compile_context>
chip_gen: v7x
topology: tpu7x:2x2x1
jax: 0.10.0
libtpu: 0.0.40
codegen_flags: <defaults>
</compile_context>

<pallas_src>
import jax
import jax.numpy as jnp
from jax import lax
from jax.experimental import pallas as pl
from jax.experimental.pallas import tpu as pltpu

SUBLANES = 8
LANES = 128
CHUNK_ROWS = 64          # inner accumulation chunk (multiple of 8 and of 32)
SMALL_BLOCK_ROWS = 512   # blocks up to this many rows are processed in one shot
MAX_BLOCK_ROWS = 4096    # streaming block height (multiple of CHUNK_ROWS)
MASK_ROW_ALIGN = 32      # int8 sublane packing: non-full mask blocks need 32-row multiples


def _cdiv(a, b):
    return -(-a // b)


def _round_up(a, b):
    return _cdiv(a, b) * b


def _round_down(a, b):
    return (a // b) * b


def _make_masked_l2_kernel(total_rows, block_r, lanes, ragged):
    """Build the kernel body. All arguments are Python statics."""
    small = block_r <= SMALL_BLOCK_ROWS

    def _accumulate(x, t, m, row_start, acc_in, acc_out):
        # x, t: (rows, lanes) native dtype; m: (rows, lanes) int8.
        rows = x.shape[0]
        d = jnp.square(x.astype(jnp.float32) - t.astype(jnp.float32))
        keep = m != 0
        if ragged:
            # Rows beyond the true spatial extent hold garbage (clamped DMA of
            # the last grid block): mask them out of BOTH sums.
            rid = lax.broadcasted_iota(jnp.int32, (rows, lanes), 0) + row_start
            valid = rid < total_rows
            sel_in = jnp.logical_and(keep, valid)
            sel_out = jnp.logical_and(jnp.logical_not(keep), valid)
        else:
            sel_in = keep
            sel_out = jnp.logical_not(keep)

        # where-select (not multiply) so non-finite pixels stay on their side.
        d_in = jnp.where(sel_in, d, 0.0)
        d_out = jnp.where(sel_out, d, 0.0)

        pad = (-rows) % SUBLANES          # only non-zero for tiny full-extent blocks
        if pad:
            z = jnp.zeros((pad, lanes), jnp.float32)
            d_in = jnp.concatenate([d_in, z], axis=0)
            d_out = jnp.concatenate([d_out, z], axis=0)
        folds = (rows + pad) // SUBLANES
        # Sublane-aligned fold: pure vreg+vreg VPU adds into an (8, lanes) slab.
        acc_in = acc_in + d_in.reshape(folds, SUBLANES, lanes).sum(axis=0)
        acc_out = acc_out + d_out.reshape(folds, SUBLANES, lanes).sum(axis=0)
        return acc_in, acc_out

    def kernel(x_ref, t_ref, m_ref, sum_in_ref, sum_out_ref):
        ch = pl.program_id(2)  # channel axis: innermost, accumulator resident

        @pl.when(ch == 0)
        def _():
            sum_in_ref[...] = jnp.zeros_like(sum_in_ref)
            sum_out_ref[...] = jnp.zeros_like(sum_out_ref)

        block_row0 = pl.program_id(1) * block_r
        zero = jnp.zeros((SUBLANES, lanes), jnp.float32)

        if small:
            acc_in, acc_out = _accumulate(
                x_ref[0, 0], t_ref[0, 0], m_ref[0, 0], block_row0, zero, zero)
        else:
            # Chunked accumulation keeps live vregs / VMEM temporaries bounded
            # even with multi-MiB streaming blocks.
            assert block_r % CHUNK_ROWS == 0

            def body(i, carry):
                r0 = pl.multiple_of(i * CHUNK_ROWS, CHUNK_ROWS)
                return _accumulate(
                    x_ref[0, 0, pl.ds(r0, CHUNK_ROWS), :],
                    t_ref[0, 0, pl.ds(r0, CHUNK_ROWS), :],
                    m_ref[0, 0, pl.ds(r0, CHUNK_ROWS), :],
                    block_row0 + r0, *carry)

            acc_in, acc_out = lax.fori_loop(0, block_r // CHUNK_ROWS, body,
                                            (zero, zero))

        sum_in_ref[...] += acc_in.reshape(1, 1, SUBLANES, lanes)
        sum_out_ref[...] += acc_out.reshape(1, 1, SUBLANES, lanes)

    return kernel


def masked_l2(input_im, target_im, mask, num_ch):
    """input_im, target_im: (N, C, H, W) float; mask: (N, 1, H, W) bool-ish."""
    assert input_im.shape == target_im.shape
    n, c, h, w = input_im.shape
    assert c == num_ch
    assert mask.shape == (n, 1, h, w)

    numel = input_im.size
    s = h * w

    # Present data as (N, C, R, L) with L on the lane axis — no padding copy.
    if s % LANES == 0:
        rows_total, lanes = s // LANES, LANES            # free row-major refold
        fold = lambda a: a.reshape(a.shape[0], a.shape[1], rows_total, lanes)
    else:
        rows_total, lanes = h, w                          # NCHW as-is, W = full lane extent
        fold = lambda a: a

    x4 = fold(input_im)                                   # native dtype (f32 or bf16)
    t4 = fold(target_im)
    m4 = fold(mask.astype(jnp.int8))                      # 1 B/elem, shared across channels

    # Streaming block height.
    if rows_total <= SMALL_BLOCK_ROWS:
        block_r = rows_total                              # full extent -> always legal
    else:
        block_r = min(MAX_BLOCK_ROWS, _round_down(rows_total, CHUNK_ROWS))

    # v7x megacore: guarantee >= 2 parallel grid blocks when batch == 1.
    if n == 1 and _cdiv(rows_total, block_r) == 1 and rows_total >= 2 * MASK_ROW_ALIGN:
        half = _cdiv(rows_total, 2)
        align = MASK_ROW_ALIGN if half <= SMALL_BLOCK_ROWS else CHUNK_ROWS
        block_r = _round_up(half, align)

    r_tiles = _cdiv(rows_total, block_r)
    ragged = (rows_total % block_r) != 0
    grid = (n, r_tiles, c)                                # channel axis innermost

    data_spec = pl.BlockSpec((1, 1, block_r, lanes), lambda b, r, ch: (b, ch, r, 0))
    # Mask index_map ignores the channel index -> tile fetched once per (b, r).
    mask_spec = pl.BlockSpec((1, 1, block_r, lanes), lambda b, r, ch: (b, 0, r, 0))
    # Output block constant across ch -> resident (8, L) accumulator; last two
    # block dims equal the full output extents (legal and lane/sublane dense).
    out_spec = pl.BlockSpec((1, 1, SUBLANES, lanes), lambda b, r, ch: (b, r, 0, 0))

    kernel = _make_masked_l2_kernel(rows_total, block_r, lanes, ragged)

    part_in, part_out = pl.pallas_call(
        kernel,
        out_shape=(jax.ShapeDtypeStruct((n, r_tiles, SUBLANES, lanes), jnp.float32),
                   jax.ShapeDtypeStruct((n, r_tiles, SUBLANES, lanes), jnp.float32)),
        grid_spec=pltpu.PrefetchScalarGridSpec(
            num_scalar_prefetch=0,
            grid=grid,
            in_specs=[data_spec, data_spec, mask_spec],
            out_specs=[out_spec, out_spec],
        ),
        compiler_params=pltpu.CompilerParams(
            dimension_semantics=("parallel", "parallel", "arbitrary"),
            vmem_limit_bytes=32 * 1024 * 1024,
        ),
    )(x4, t4, m4)

    loss_in = jnp.nan_to_num(jnp.sum(part_in) / numel)
    loss_out = jnp.nan_to_num(jnp.sum(part_out) / numel)
    return loss_in, loss_out


def masked_l2_ref(input_im, target_im, mask, num_ch):
    """Pure-JAX reference mirroring the PyTorch module."""
    if num_ch > 1:
        mask = jnp.broadcast_to(mask, input_im.shape)
    diff = jnp.square(input_im.astype(jnp.float32) - target_im.astype(jnp.float32))
    numel = diff.size
    loss_in = jnp.nan_to_num(jnp.sum(jnp.where(mask, diff, 0.0)) / numel)
    loss_out = jnp.nan_to_num(jnp.sum(jnp.where(mask, 0.0, diff)) / numel)
    return loss_in, loss_out


def _check(got, want, what):
    gi, go = got
    wi, wo = want
    assert jnp.allclose(gi, wi, rtol=1e-4, atol=1e-6), (what, gi, wi)
    assert jnp.allclose(go, wo, rtol=1e-4, atol=1e-6), (what, go, wo)


if __name__ == "__main__":
    key = jax.random.PRNGKey(0)
    k1, k2, k3 = jax.random.split(key, 3)

    # Primary case: H*W % 128 == 0 -> free (rows, 128) refold path.
    N, C, H, W = 2, 4, 16, 16
    input_im = jax.random.normal(k1, (N, C, H, W), dtype=jnp.float32)
    target_im = jax.random.normal(k2, (N, C, H, W), dtype=jnp.float32)
    mask = jax.random.bernoulli(k3, p=0.5, shape=(N, 1, H, W))

    out = masked_l2(input_im, target_im, mask, C)
    jax.block_until_ready(out)
    _check(out, masked_l2_ref(input_im, target_im, mask, C), "base")

    # Non-finite pixel: where-based masking must keep the other side clean,
    # matching the reference's boolean-indexing semantics + nan_to_num.
    bad = input_im.at[0, :, 3, 5].set(jnp.nan)
    out = masked_l2(bad, target_im, mask, C)
    jax.block_until_ready(out)
    _check(out, masked_l2_ref(bad, target_im, mask, C), "nan")

    # Ragged H*W (not a multiple of 128): direct NCHW path + pad-to-8 fold.
    k4, k5, k6 = jax.random.split(jax.random.PRNGKey(1), 3)
    x2 = jax.random.normal(k4, (2, 3, 7, 9), dtype=jnp.float32)
    t2 = jax.random.normal(k5, (2, 3, 7, 9), dtype=jnp.float32)
    m2 = jax.random.bernoulli(k6, p=0.3, shape=(2, 1, 7, 9))
    out = masked_l2(x2, t2, m2, 3)
    jax.block_until_ready(out)
    _check(out, masked_l2_ref(x2, t2, m2, 3), "ragged_nchw")

    # Batch-1 megacore split with a ragged spatial-tile tail.
    k7, k8, k9 = jax.random.split(jax.random.PRNGKey(2), 3)
    x3 = jax.random.normal(k7, (1, 2, 96, 96), dtype=jnp.float32)
    t3 = jax.random.normal(k8, (1, 2, 96, 96), dtype=jnp.float32)
    m3 = jax.random.bernoulli(k9, p=0.5, shape=(1, 1, 96, 96))
    out = masked_l2(x3, t3, m3, 2)
    jax.block_until_ready(out)
    _check(out, masked_l2_ref(x3, t3, m3, 2), "megacore_split")

    print("KERNEL_OK")
</pallas_src>

<mosaic_0001>
module attributes {stable_mosaic.version = 11 : i64} {
  func.func @kernel(%arg0: i32, %arg1: i32, %arg2: i32, %arg3: memref<1x1x2x128xf32, #tpu.memory_space<vmem>>, %arg4: memref<1x1x2x128xf32, #tpu.memory_space<vmem>>, %arg5: memref<1x1x2x128xi8, #tpu.memory_space<vmem>>, %arg6: memref<1x1x8x128xf32, #tpu.memory_space<vmem>>, %arg7: memref<1x1x8x128xf32, #tpu.memory_space<vmem>>) attributes {dimension_semantics = [#tpu.dimension_semantics<parallel>, #tpu.dimension_semantics<parallel>, #tpu.dimension_semantics<arbitrary>], iteration_bounds = array<i64: 2, 1, 4>, scalar_prefetch = 0 : i64, scratch_operands = 0 : i64, tpu.core_type = #tpu.core_type<tc>, window_params = [{transform_indices = @transform_0, window_bounds = array<i64: 1, 1, 2, 128>}, {transform_indices = @transform_1, window_bounds = array<i64: 1, 1, 2, 128>}, {transform_indices = @transform_2, window_bounds = array<i64: 1, 1, 2, 128>}, {transform_indices = @transform_3, window_bounds = array<i64: 1, 1, 8, 128>}, {transform_indices = @transform_4, window_bounds = array<i64: 1, 1, 8, 128>}]} {
    %c0_i32 = arith.constant 0 : i32
    %0 = arith.cmpi eq, %arg2, %c0_i32 : i32
    %1 = arith.extui %0 : i1 to i32
    %c0_i32_0 = arith.constant 0 : i32
    %2 = arith.cmpi ne, %1, %c0_i32_0 : i32
    scf.if %2 {
      %cst_34 = arith.constant 0.000000e+00 : f32
      %36 = vector.broadcast %cst_34 : f32 to vector<1x1x8x128xf32>
      %c0_35 = arith.constant 0 : index
      %c0_36 = arith.constant 0 : index
      %c0_37 = arith.constant 0 : index
      %c0_38 = arith.constant 0 : index
      %37 = vector.load %arg6[%c0_35, %c0_36, %c0_37, %c0_38] : memref<1x1x8x128xf32, #tpu.memory_space<vmem>>, vector<1x1x8x128xf32>
      tpu.vector_store %arg6[%c0_35, %c0_36, %c0_37, %c0_38], %36 {strides = array<i32>} : memref<1x1x8x128xf32, #tpu.memory_space<vmem>>, vector<1x1x8x128xf32>,
      %cst_39 = arith.constant 0.000000e+00 : f32
      %38 = vector.broadcast %cst_39 : f32 to vector<1x1x8x128xf32>
      %c0_40 = arith.constant 0 : index
      %c0_41 = arith.constant 0 : index
      %c0_42 = arith.constant 0 : index
      %c0_43 = arith.constant 0 : index
      %39 = vector.load %arg7[%c0_40, %c0_41, %c0_42, %c0_43] : memref<1x1x8x128xf32, #tpu.memory_space<vmem>>, vector<1x1x8x128xf32>
      tpu.vector_store %arg7[%c0_40, %c0_41, %c0_42, %c0_43], %38 {strides = array<i32>} : memref<1x1x8x128xf32, #tpu.memory_space<vmem>>, vector<1x1x8x128xf32>,
    } else {
    }
    %cst = arith.constant 0.000000e+00 : f32
    %3 = vector.broadcast %cst : f32 to vector<8x128xf32>
    %c0 = arith.constant 0 : index
    %c0_1 = arith.constant 0 : index
    %c0_2 = arith.constant 0 : index
    %c0_3 = arith.constant 0 : index
    %4 = vector.load %arg3[%c0, %c0_1, %c0_2, %c0_3] : memref<1x1x2x128xf32, #tpu.memory_space<vmem>>, vector<1x1x2x128xf32>
    %5 = vector.shape_cast %4 : vector<1x1x2x128xf32> to vector<2x128xf32>
    %c0_4 = arith.constant 0 : index
    %c0_5 = arith.constant 0 : index
    %c0_6 = arith.constant 0 : index
    %c0_7 = arith.constant 0 : index
    %6 = vector.load %arg4[%c0_4, %c0_5, %c0_6, %c0_7] : memref<1x1x2x128xf32, #tpu.memory_space<vmem>>, vector<1x1x2x128xf32>
    %7 = vector.shape_cast %6 : vector<1x1x2x128xf32> to vector<2x128xf32>
    %c0_8 = arith.constant 0 : index
    %c0_9 = arith.constant 0 : index
    %c0_10 = arith.constant 0 : index
    %c0_11 = arith.constant 0 : index
    %8 = vector.load %arg5[%c0_8, %c0_9, %c0_10, %c0_11] : memref<1x1x2x128xi8, #tpu.memory_space<vmem>>, vector<1x1x2x128xi8>
    %9 = vector.shape_cast %8 : vector<1x1x2x128xi8> to vector<2x128xi8>
    %10 = arith.subf %5, %7 : vector<2x128xf32>
    %11 = arith.mulf %10, %10 : vector<2x128xf32>
    %c0_i8 = arith.constant 0 : i8
    %12 = vector.broadcast %c0_i8 : i8 to vector<2x128xi8>
    %13 = arith.cmpi ne, %9, %12 : vector<2x128xi8>
    %cst_12 = arith.constant dense<true> : vector<2x128xi1>
    %14 = arith.xori %13, %cst_12 : vector<2x128xi1>
    %cst_13 = arith.constant 0.000000e+00 : f32
    %15 = vector.broadcast %cst_13 : f32 to vector<2x128xf32>
    %16 = arith.select %13, %11, %15 : vector<2x128xi1>, vector<2x128xf32>
    %cst_14 = arith.constant 0.000000e+00 : f32
    %17 = vector.broadcast %cst_14 : f32 to vector<2x128xf32>
    %18 = arith.select %14, %11, %17 : vector<2x128xi1>, vector<2x128xf32>
    %cst_15 = arith.constant 0.000000e+00 : f32
    %19 = vector.broadcast %cst_15 : f32 to vector<6x128xf32>
    %20 = tpu.concatenate %16, %19 in 0 : vector<2x128xf32>, vector<6x128xf32> -> vector<8x128xf32>
    %21 = tpu.concatenate %18, %19 in 0 : vector<2x128xf32>, vector<6x128xf32> -> vector<8x128xf32>
    %22 = vector.shape_cast %20 : vector<8x128xf32> to vector<1x8x128xf32>
    %cst_16 = arith.constant dense<0.000000e+00> : vector<8x128xf32>
    %23 = vector.multi_reduction <add>, %22, %cst_16 [0] : vector<1x8x128xf32> to vector<8x128xf32>
    %24 = arith.addf %3, %23 : vector<8x128xf32>
    %25 = vector.shape_cast %21 : vector<8x128xf32> to vector<1x8x128xf32>
    %cst_17 = arith.constant dense<0.000000e+00> : vector<8x128xf32>
    %26 = vector.multi_reduction <add>, %25, %cst_17 [0] : vector<1x8x128xf32> to vector<8x128xf32>
    %27 = arith.addf %3, %26 : vector<8x128xf32>
    %c0_18 = arith.constant 0 : index
    %c0_19 = arith.constant 0 : index
    %c0_20 = arith.constant 0 : index
    %c0_21 = arith.constant 0 : index
    %28 = vector.load %arg6[%c0_18, %c0_19, %c0_20, %c0_21] : memref<1x1x8x128xf32, #tpu.memory_space<vmem>>, vector<1x1x8x128xf32>
    %29 = vector.shape_cast %24 : vector<8x128xf32> to vector<1x1x8x128xf32>
    %30 = arith.addf %28, %29 : vector<1x1x8x128xf32>
    %c0_22 = arith.constant 0 : index
    %c0_23 = arith.constant 0 : index
    %c0_24 = arith.constant 0 : index
    %c0_25 = arith.constant 0 : index
    %31 = vector.load %arg6[%c0_22, %c0_23, %c0_24, %c0_25] : memref<1x1x8x128xf32, #tpu.memory_space<vmem>>, vector<1x1x8x128xf32>
    tpu.vector_store %arg6[%c0_22, %c0_23, %c0_24, %c0_25], %30 {strides = array<i32>} : memref<1x1x8x128xf32, #tpu.memory_space<vmem>>, vector<1x1x8x128xf32>,
    %c0_26 = arith.constant 0 : index
    %c0_27 = arith.constant 0 : index
    %c0_28 = arith.constant 0 : index
    %c0_29 = arith.constant 0 : index
    %32 = vector.load %arg7[%c0_26, %c0_27, %c0_28, %c0_29] : memref<1x1x8x128xf32, #tpu.memory_space<vmem>>, vector<1x1x8x128xf32>
    %33 = vector.shape_cast %27 : vector<8x128xf32> to vector<1x1x8x128xf32>
    %34 = arith.addf %32, %33 : vector<1x1x8x128xf32>
    %c0_30 = arith.constant 0 : index
    %c0_31 = arith.constant 0 : index
    %c0_32 = arith.constant 0 : index
    %c0_33 = arith.constant 0 : index
    %35 = vector.load %arg7[%c0_30, %c0_31, %c0_32, %c0_33] : memref<1x1x8x128xf32, #tpu.memory_space<vmem>>, vector<1x1x8x128xf32>
    tpu.vector_store %arg7[%c0_30, %c0_31, %c0_32, %c0_33], %34 {strides = array<i32>} : memref<1x1x8x128xf32, #tpu.memory_space<vmem>>, vector<1x1x8x128xf32>,
    return
  }
  func.func @transform_0(%arg0: i32, %arg1: i32, %arg2: i32) -> (i32, i32, i32, i32) {
    %c0_i32 = arith.constant 0 : i32
    %c0_i32_0 = arith.constant 0 : i32
    return %arg0, %arg2, %arg1, %c0_i32 : i32, i32, i32, i32
  }
  func.func @transform_1(%arg0: i32, %arg1: i32, %arg2: i32) -> (i32, i32, i32, i32) {
    %c0_i32 = arith.constant 0 : i32
    %c0_i32_0 = arith.constant 0 : i32
    return %arg0, %arg2, %arg1, %c0_i32 : i32, i32, i32, i32
  }
  func.func @transform_2(%arg0: i32, %arg1: i32, %arg2: i32) -> (i32, i32, i32, i32) {
    %c0_i32 = arith.constant 0 : i32
    %c0_i32_0 = arith.constant 0 : i32
    %c0_i32_1 = arith.constant 0 : i32
    return %arg0, %c0_i32, %arg1, %c0_i32_0 : i32, i32, i32, i32
  }
  func.func @transform_3(%arg0: i32, %arg1: i32, %arg2: i32) -> (i32, i32, i32, i32) {
    %c0_i32 = arith.constant 0 : i32
    %c0_i32_0 = arith.constant 0 : i32
    %c0_i32_1 = arith.constant 0 : i32
    return %arg0, %arg1, %c0_i32, %c0_i32_0 : i32, i32, i32, i32
  }
  func.func @transform_4(%arg0: i32, %arg1: i32, %arg2: i32) -> (i32, i32, i32, i32) {
    %c0_i32 = arith.constant 0 : i32
    %c0_i32_0 = arith.constant 0 : i32
    %c0_i32_1 = arith.constant 0 : i32
    return %arg0, %arg1, %c0_i32, %c0_i32_0 : i32, i32, i32, i32
  }
}

</mosaic_0001>

<llo_original>
// kernel: tpu_custom_call.1
$region0: #{tpu_custom_call.1}
  #allocation0 [shape = 'u32[]', space=smem, size = 0x4, offset = 0x4, fixed_abs, tag = 'smem constant byte address 0x4 - core index']
  #allocation1 [shape = 'u32[144,128]{1,0:T(1,128)}', space=vmem, size = 0x12000, scoped, tag = 'internal scratch']
  %s0 = inlined_call_operand.hbm [shape: f32[2,4,2,128], index: 0, kind: input, shape index: {}]
  %s1 = inlined_call_operand.hbm [shape: f32[2,4,2,128], index: 1, kind: input, shape index: {}]
  %s2 = inlined_call_operand.vmem [shape: s8[2,1,2,128], index: 2, kind: input, shape index: {}]
  %s3 = inlined_call_operand.hbm [shape: f32[2,1,8,128], index: 3, kind: output, shape index: {0}]
  %s4 = inlined_call_operand.hbm [shape: f32[2,1,8,128], index: 4, kind: output, shape index: {1}]
  %5 = xla_tuple %s3, %s4
  %s6 = sld [smem:[#allocation0]]
  $region65: #{tpu_custom_call.1} parent=0
    _
  %s8 = ssub.s32 1, %s6
  %s9 = scalar_select 0, %s8, %s6
  $region1: #{tpu_custom_call.1} parent=0
    #allocation2 [shape = 'u8[2048]{0}', space=vmem, size = 0x800, scoped, tag = 'input window, operand 0']
    #allocation3 [shape = 's32[2]{0}', space=sflag, size = 0x8, scoped, tag = 'scoped memory for tpu_custom_call.1']
    #allocation4 [shape = 's32[2]{0}', space=sflag, size = 0x8, scoped, tag = 'scoped memory for tpu_custom_call.1']
    #allocation5 [shape = 'u8[2048]{0}', space=vmem, size = 0x800, scoped, tag = 'input window, operand 1']
    #allocation6 [shape = 's32[2]{0}', space=sflag, size = 0x8, scoped, tag = 'scoped memory for tpu_custom_call.1']
    #allocation7 [shape = 'u8[8192]{0}', space=vmem, size = 0x2000, scoped, tag = 'output window, operand 0']
    #allocation8 [shape = 'u8[8192]{0}', space=vmem, size = 0x2000, scoped, tag = 'output window, operand 1']
    #allocation9 [shape = 's32[2]{0}', space=sflag, size = 0x8, scoped, tag = 'scoped memory for tpu_custom_call.1']
    %10 = vsyncpa [#allocation3], 0
    %s11 = scalar_lea.sflag [#allocation3], 1
    %12 = vsyncpa %s11, 0
    %13 = vsyncpa [#allocation6], 0
    %s14 = scalar_lea.sflag [#allocation6], 1
    %15 = vsyncpa %s14, 0
    %16 = vsyncpa [#allocation4], 0
    %s17 = scalar_lea.sflag [#allocation4], 1
    %18 = vsyncpa %s17, 0
    %19 = vsyncpa [#allocation9], 0
    %s20 = scalar_lea.sflag [#allocation9], 1
    %21 = vsyncpa %s20, 0
    loop: start=0, step=1, limit=10
    $region2: #{tpu_custom_call.1} parent=1 // loop_pre_header
      _
    $region3: #{tpu_custom_call.1} parent=1 // loop_header
      %s23 = sphi 0, %s27
      %p24 = scmp.ge.s32.totalorder %s23, 10
      %s30 = sphi 0, %s49
      %s31 = sphi 0, %s45
      %s32 = sphi 0, %s41
      %s33 = sphi 0, %s30
      %s34 = sphi 0, %s31
      %s35 = sphi 0, %s32
      %s36 = sphi 0, %s33
      %s37 = sphi 0, %s34
      %s38 = sphi 0, %s35
      %s56 = sphi 0, %s58
      %s59 = sphi 0, %s56
      %s60 = sphi 0, %s59
      %s76 = sphi 0, %s60
      %s86 = sphi 0, %s88
      %s89 = sphi 0, %s86
      %s90 = sphi 0, %s89
      %s106 = sphi 0, %s90
      %s114 = sphi 0, %s116
      %s117 = sphi 0, %s114
      %s118 = sphi 0, %s117
      %s134 = sphi 0, %s118
      %s142 = sphi 0, %s144
      %s145 = sphi 0, %s142
      %s146 = sphi 0, %s145
      %s162 = sphi 0, %s146
      %s170 = sphi 0, %s172
      %s173 = sphi 0, %s170
      %s174 = sphi 0, %s173
      %s190 = sphi 0, %s174
    $region4: #{tpu_custom_call.1} parent=1 // loop_header_branch
      %26 = sbr.rel (%p24) target = $region8
    $region5: #{tpu_custom_call.1} parent=1 // loop_body
      %s28 = ssub.s32 %s23, 1
      %s29 = ssub.s32 %s23, 2
      %s39 = sadd.s32 1, %s32
      %p40 = scmp.ge.s32.totalorder %s39, 4
      %s41 = scalar_select %p40, 0, %s39
      %s42 = sadd.s32 1, %s31
      %s43 = scalar_select %p40, %s42, %s31
      %p44 = scmp.ge.s32.totalorder %s43, 1
      %s45 = scalar_select %p44, 0, %s43
      %s46 = sadd.s32 1, %s30
      %s47 = scalar_select %p44, %s46, %s30
      %p48 = scmp.ge.s32.totalorder %s47, 2
      %s49 = scalar_select %p48, 0, %s47
      %s50 = ssub.s32 %s30, %s49
      %s51 = ssub.s32 %s32, %s41
      %s52 = sor.u32 %s50, %s51
      %s53 = ssub.s32 %s31, %s45
      %s54 = sor.u32 %s52, %s53
      %p55 = scmp.eq.s32.totalorder %s54, 0
      %s57 = sadd.s32 %s56, 1
      %s58 = scalar_select %p55, %s56, %s57
      %p61 = pneg %p55
      %p62 = scmp.eq.s32.totalorder %s23, 7
      %p63 = por %p61, %p62
      %p64 = scmp.ne.s32.totalorder %s56, %s59
      %p65 = scmp.eq.s32.totalorder %s23, 0
      %p66 = por %p64, %p65
      %p67 = scmp.ne.s32.totalorder %s56, %s59
      %p68 = scmp.eq.s32.totalorder %s28, 7
      %p69 = por %p67, %p68
      %p70 = scmp.ne.s32.totalorder %s59, %s60
      %p71 = scmp.eq.s32.totalorder %s28, 0
      %p72 = por %p70, %p71
      %p73 = scmp.ne.s32.totalorder %s59, %s60
      %p74 = scmp.eq.s32.totalorder %s29, 7
      %p75 = por %p73, %p74
      %p77 = scmp.ne.s32.totalorder %s60, %s76
      %p78 = scmp.eq.s32.totalorder %s29, 0
      %p79 = por %p77, %p78
      %s80 = ssub.s32 %s30, %s49
      %s81 = ssub.s32 %s32, %s41
      %s82 = sor.u32 %s80, %s81
      %s83 = ssub.s32 %s31, %s45
      %s84 = sor.u32 %s82, %s83
      %p85 = scmp.eq.s32.totalorder %s84, 0
      %s87 = sadd.s32 %s86, 1
      %s88 = scalar_select %p85, %s86, %s87
      %p91 = pneg %p85
      %p92 = scmp.eq.s32.totalorder %s23, 7
      %p93 = por %p91, %p92
      %p94 = scmp.ne.s32.totalorder %s86, %s89
      %p95 = scmp.eq.s32.totalorder %s23, 0
      %p96 = por %p94, %p95
      %p97 = scmp.ne.s32.totalorder %s86, %s89
      %p98 = scmp.eq.s32.totalorder %s28, 7
      %p99 = por %p97, %p98
      %p100 = scmp.ne.s32.totalorder %s89, %s90
      %p101 = scmp.eq.s32.totalorder %s28, 0
      %p102 = por %p100, %p101
      %p103 = scmp.ne.s32.totalorder %s89, %s90
      %p104 = scmp.eq.s32.totalorder %s29, 7
      %p105 = por %p103, %p104
      %p107 = scmp.ne.s32.totalorder %s90, %s106
      %p108 = scmp.eq.s32.totalorder %s29, 0
      %p109 = por %p107, %p108
      %s110 = ssub.s32 %s30, %s49
      %s111 = ssub.s32 %s31, %s45
      %s112 = sor.u32 %s110, %s111
      %p113 = scmp.eq.s32.totalorder %s112, 0
      %s115 = sadd.s32 %s114, 1
      %s116 = scalar_select %p113, %s114, %s115
      %p119 = pneg %p113
      %p120 = scmp.eq.s32.totalorder %s23, 7
      %p121 = por %p119, %p120
      %p122 = scmp.ne.s32.totalorder %s114, %s117
      %p123 = scmp.eq.s32.totalorder %s23, 0
      %p124 = por %p122, %p123
      %p125 = scmp.ne.s32.totalorder %s114, %s117
      %p126 = scmp.eq.s32.totalorder %s28, 7
      %p127 = por %p125, %p126
      %p128 = scmp.ne.s32.totalorder %s117, %s118
      %p129 = scmp.eq.s32.totalorder %s28, 0
      %p130 = por %p128, %p129
      %p131 = scmp.ne.s32.totalorder %s117, %s118
      %p132 = scmp.eq.s32.totalorder %s29, 7
      %p133 = por %p131, %p132
      %p135 = scmp.ne.s32.totalorder %s118, %s134
      %p136 = scmp.eq.s32.totalorder %s29, 0
      %p137 = por %p135, %p136
      %s138 = ssub.s32 %s30, %s49
      %s139 = ssub.s32 %s31, %s45
      %s140 = sor.u32 %s138, %s139
      %p141 = scmp.eq.s32.totalorder %s140, 0
      %s143 = sadd.s32 %s142, 1
      %s144 = scalar_select %p141, %s142, %s143
      %p147 = pneg %p141
      %p148 = scmp.eq.s32.totalorder %s23, 7
      %p149 = por %p147, %p148
      %p150 = scmp.ne.s32.totalorder %s142, %s145
      %p151 = scmp.eq.s32.totalorder %s23, 0
      %p152 = por %p150, %p151
      %p153 = scmp.ne.s32.totalorder %s142, %s145
      %p154 = scmp.eq.s32.totalorder %s28, 7
      %p155 = por %p153, %p154
      %p156 = scmp.ne.s32.totalorder %s145, %s146
      %p157 = scmp.eq.s32.totalorder %s28, 0
      %p158 = por %p156, %p157
      %p159 = scmp.ne.s32.totalorder %s145, %s146
      %p160 = scmp.eq.s32.totalorder %s29, 7
      %p161 = por %p159, %p160
      %p163 = scmp.ne.s32.totalorder %s146, %s162
      %p164 = scmp.eq.s32.totalorder %s29, 0
      %p165 = por %p163, %p164
      %s166 = ssub.s32 %s30, %s49
      %s167 = ssub.s32 %s31, %s45
      %s168 = sor.u32 %s166, %s167
      %p169 = scmp.eq.s32.totalorder %s168, 0
      %s171 = sadd.s32 %s170, 1
      %s172 = scalar_select %p169, %s170, %s171
      %p175 = pneg %p169
      %p176 = scmp.eq.s32.totalorder %s23, 7
      %p177 = por %p175, %p176
      %p178 = scmp.ne.s32.totalorder %s170, %s173
      %p179 = scmp.eq.s32.totalorder %s23, 0
      %p180 = por %p178, %p179
      %p181 = scmp.ne.s32.totalorder %s170, %s173
      %p182 = scmp.eq.s32.totalorder %s28, 7
      %p183 = por %p181, %p182
      %p184 = scmp.ne.s32.totalorder %s173, %s174
      %p185 = scmp.eq.s32.totalorder %s28, 0
      %p186 = por %p184, %p185
      %p187 = scmp.ne.s32.totalorder %s173, %s174
      %p188 = scmp.eq.s32.totalorder %s29, 7
      %p189 = por %p187, %p188
      %p191 = scmp.ne.s32.totalorder %s174, %s190
      %p192 = scmp.eq.s32.totalorder %s29, 0
      %p193 = por %p191, %p192
      %p194 = scmp.le.s32.totalorder 1, %s23
      %p195 = scmp.lt.s32.totalorder %s23, 9
      %p196 = pnand %p194, %p195
      %p197 = pneg %p196
      // Predicated region
      $region9: #{tpu_custom_call.1} parent=5 // pred_check
        _
      $region10: #{tpu_custom_call.1} parent=5 // pred_check_branch
        %199 = sbr.rel (%p196) target = $region12
      $region11: #{tpu_custom_call.1} parent=5 // pred_region
        %s200 = ssub.s32 %s23, 1
      $region12: #{tpu_custom_call.1} parent=5 // pred_fallthru
        _
      %p201 = scmp.lt.s32.totalorder %s23, 8
      // Predicated region
      $region13: #{tpu_custom_call.1} parent=5 // pred_check
        %p202 = pneg %p201
      $region14: #{tpu_custom_call.1} parent=5 // pred_check_branch
        %204 = sbr.rel (%p202) target = $region16
      $region15: #{tpu_custom_call.1} parent=5 // pred_region
        // Predicated region
        $region17: #{tpu_custom_call.1} parent=15 // pred_check
          %p205 = pneg %p66
        $region18: #{tpu_custom_call.1} parent=15 // pred_check_branch
          %207 = sbr.rel (%p205) target = $region20
        $region19: #{tpu_custom_call.1} parent=15 // pred_region
          %s208 = sand.u32 %s56, 1
          %s209 = scalar_lea.sflag [#allocation3], %s208
          %s210 = sand.u32 %s56, 1
          %s211 = smul.addr %s210, 2
          %s212 = scalar_lea.vmem [#allocation2], %s211
          %s214 = ssub.s32 32, 32
          %215 = vsyncadd %s209, %s214
          %s216 = sadd.s32 %s31, %s32
          %s217 = smul.addr %s30, 4
          %s218 = sadd.s32 %s216, %s217
          %s219 = smul.addr %s218, 32
          %s220 = scalar_lea.hbm %s0, %s219
          %s222 = sshll.u32 %s212, 4
          %s223 = int_to_ptr.vmem [resolvable:$true] %s222
          %225 = dma.hbm_to_vmem [thread:$0]  %s220, 32, %s223, %s209
        $region20: #{tpu_custom_call.1} parent=15 // pred_fallthru
          _
        // Predicated region
        $region21: #{tpu_custom_call.1} parent=15 // pred_check
          %p226 = pneg %p96
        $region22: #{tpu_custom_call.1} parent=15 // pred_check_branch
          %228 = sbr.rel (%p226) target = $region24
        $region23: #{tpu_custom_call.1} parent=15 // pred_region
          %s229 = sand.u32 %s86, 1
          %s230 = scalar_lea.sflag [#allocation6], %s229
          %s231 = sand.u32 %s86, 1
          %s232 = smul.addr %s231, 2
          %s233 = scalar_lea.vmem [#allocation5], %s232
          %s235 = ssub.s32 32, 32
          %236 = vsyncadd %s230, %s235
          %s237 = sadd.s32 %s31, %s32
          %s238 = smul.addr %s30, 4
          %s239 = sadd.s32 %s237, %s238
          %s240 = smul.addr %s239, 32
          %s241 = scalar_lea.hbm %s1, %s240
          %s243 = sshll.u32 %s233, 4
          %s244 = int_to_ptr.vmem [resolvable:$true] %s243
          %246 = dma.hbm_to_vmem [thread:$0]  %s241, 32, %s244, %s230
        $region24: #{tpu_custom_call.1} parent=15 // pred_fallthru
          _
        // Predicated region
        $region25: #{tpu_custom_call.1} parent=15 // pred_check
          %p247 = pneg %p124
        $region26: #{tpu_custom_call.1} parent=15 // pred_check_branch
          %249 = sbr.rel (%p247) target = $region28
        $region27: #{tpu_custom_call.1} parent=15 // pred_region
          %p250 = scmp.lt.s32.totalorder %s30, 1
          %s251 = scalar_select %p250, %s30, 1
          %p252 = scmp.lt.s32.totalorder %s31, 0
          %s253 = scalar_select %p252, %s31, 0
          %s254 = sadd.s32 %s253, %s251
          %s255 = scalar_lea.vmem %s2, %s254
        $region28: #{tpu_custom_call.1} parent=15 // pred_fallthru
          _
      $region16: #{tpu_custom_call.1} parent=5 // pred_fallthru
        _
      %p256 = scmp.le.s32.totalorder 1, %s23
      %p257 = scmp.lt.s32.totalorder %s23, 9
      %p258 = pnand %p256, %p257
      %p259 = pneg %p258
      // Predicated region
      $region29: #{tpu_custom_call.1} parent=5 // pred_check
        _
      $region30: #{tpu_custom_call.1} parent=5 // pred_check_branch
        %261 = sbr.rel (%p258) target = $region32
      $region31: #{tpu_custom_call.1} parent=5 // pred_region
        %s262 = ssub.s32 %s23, 1
        %s263 = sand.u32 %s59, 1
        %s264 = scalar_lea.sflag [#allocation3], %s263
        %s265 = sand.u32 %s59, 1
        %s266 = smul.addr %s265, 2
        %s267 = scalar_lea.vmem [#allocation2], %s266
        // Predicated region
        $region33: #{tpu_custom_call.1} parent=31 // pred_check
          %p268 = pneg %p72
        $region34: #{tpu_custom_call.1} parent=31 // pred_check_branch
          %270 = sbr.rel (%p268) target = $region36
        $region35: #{tpu_custom_call.1} parent=31 // pred_region
          %271 = dma.done %s264, 32
        $region36: #{tpu_custom_call.1} parent=31 // pred_fallthru
          _
        %s272 = sand.u32 %s89, 1
        %s273 = scalar_lea.sflag [#allocation6], %s272
        %s274 = sand.u32 %s89, 1
        %s275 = smul.addr %s274, 2
        %s276 = scalar_lea.vmem [#allocation5], %s275
        // Predicated region
        $region37: #{tpu_custom_call.1} parent=31 // pred_check
          %p277 = pneg %p102
        $region38: #{tpu_custom_call.1} parent=31 // pred_check_branch
          %279 = sbr.rel (%p277) target = $region40
        $region39: #{tpu_custom_call.1} parent=31 // pred_region
          %280 = dma.done %s273, 32
        $region40: #{tpu_custom_call.1} parent=31 // pred_fallthru
          _
        %s281 = sand.u32 %s59, 1
        %s282 = scalar_lea.sflag [#allocation3], %s281
        %s283 = sand.u32 %s59, 1
        %s284 = smul.addr %s283, 2
        %s285 = scalar_lea.vmem [#allocation2], %s284
        %p286 = pneg %p72
        %p287 = pneg %p69
        %s288 = sand.u32 %s89, 1
        %s289 = scalar_lea.sflag [#allocation6], %s288
        %s290 = sand.u32 %s89, 1
        %s291 = smul.addr %s290, 2
        %s292 = scalar_lea.vmem [#allocation5], %s291
        %p293 = pneg %p102
        %p294 = pneg %p99
        %p295 = scmp.lt.s32.totalorder %s33, 1
        %s296 = scalar_select %p295, %s33, 1
        %p297 = scmp.lt.s32.totalorder %s34, 0
        %s298 = scalar_select %p297, %s34, 0
        %s299 = sadd.s32 %s298, %s296
        %s300 = scalar_lea.vmem %s2, %s299
        %p301 = pneg %p130
        %p302 = pneg %p127
        %p303 = pneg %p158
        %p304 = pneg %p155
        %s305 = sand.u32 %s145, 1
        %s306 = scalar_lea.sflag [#allocation4], %s305
        %s307 = sand.u32 %s145, 1
        %s308 = smul.addr %s307, 8
        %s309 = scalar_lea.vmem [#allocation7], %s308
        %p310 = pneg %p186
        %p311 = pneg %p183
        %s312 = sand.u32 %s173, 1
        %s313 = scalar_lea.sflag [#allocation9], %s312
        %s314 = sand.u32 %s173, 1
        %s315 = smul.addr %s314, 8
        %s316 = scalar_lea.vmem [#allocation8], %s315
        %p317 = scmp.lt.s32.totalorder %s33, 1
        %s318 = scalar_select %p317, %s33, 1
        %p319 = scmp.lt.s32.totalorder %s34, 0
        %s320 = scalar_select %p319, %s34, 0
        %s321 = sadd.s32 %s320, %s318
        %s322 = scalar_lea.vmem %s2, %s321
        %p325 = scmp.eq.s32.totalorder %s35, 0
        // Predicated region
        $region41: #{tpu_custom_call.1} parent=31 // pred_check
          %p326 = pneg %p325
        $region42: #{tpu_custom_call.1} parent=31 // pred_check_branch
          %328 = sbr.rel (%p326) target = $region44
        $region43: #{tpu_custom_call.1} parent=31 // pred_region
          %329 = vst [vmem:[%s309] sm:$0xff] 0.0
          %330 = vst [vmem:[%s316] sm:$0xff] 0.0
        $region44: #{tpu_custom_call.1} parent=31 // pred_fallthru
          _
        %v331 = vld [vmem:[%s267] sm:$0x3]
        %v332 = vld [vmem:[%s276] sm:$0x3]
        %v333 = vld [vmem:[%s322] sm:$0x1]
        %v334 = vsub.f32 %v331, %v332
        %v335 = vmul.f32 %v334, %v334
        %vm336 = vnez %v333
        %v337 = vsel 1, 1, 0
        %v338 = vpack.c.b16 %v337, %v337
        %v339 = vpack.c.b8 %v338, %v338
        %vm340 = vnez %v339
        %vm341 = vmxor %vm336, %vm340
        %v342 = vsel %vm336, 16843009, 0
        %v343 = vunpack.c.0.s8 %v342
        %vm344 = vcmp.ne.s32.totalorder %v343, 0
        %v345 = vsel %vm344, %v335, 0.0
        %v346 = vsel %vm341, 16843009, 0
        %v347 = vunpack.c.0.s8 %v346
        %vm348 = vcmp.ne.s32.totalorder %v347, 0
        %v349 = vsel %vm348, %v335, 0.0
        %vm350 = vcmask 1041408
        %v351 = vsel %vm350, %v345, 0.0
        %v352 = vsel %vm350, %v349, 0.0
        %v353 = vadd.f32 %v351, 0.0
        %v354 = vadd.f32 %v353, 0.0
        %v355 = vadd.f32 %v352, 0.0
        %v356 = vadd.f32 %v355, 0.0
        %v357 = vld [vmem:[%s309] sm:$0xff]
        %v358 = vadd.f32 %v357, %v354
        %359 = vst [vmem:[%s309] sm:$0xff] %v358
        %v360 = vld [vmem:[%s316] sm:$0xff]
        %v361 = vadd.f32 %v360, %v356
        %362 = vst [vmem:[%s316] sm:$0xff] %v361
        %s363 = sand.u32 %s145, 1
        %s364 = scalar_lea.sflag [#allocation4], %s363
        %s365 = sand.u32 %s145, 1
        %s366 = smul.addr %s365, 8
        %s367 = scalar_lea.vmem [#allocation7], %s366
        %s368 = sand.u32 %s173, 1
        %s369 = scalar_lea.sflag [#allocation9], %s368
        %s370 = sand.u32 %s173, 1
        %s371 = smul.addr %s370, 8
        %s372 = scalar_lea.vmem [#allocation8], %s371
        // Predicated region
        $region45: #{tpu_custom_call.1} parent=31 // pred_check
          %p373 = pneg %p155
        $region46: #{tpu_custom_call.1} parent=31 // pred_check_branch
          %375 = sbr.rel (%p373) target = $region48
        $region47: #{tpu_custom_call.1} parent=31 // pred_region
          %s377 = ssub.s32 128, 128
          %378 = vsyncadd %s364, %s377
          %s379 = sadd.s32 %s34, %s33
          %s380 = smul.addr %s379, 128
          %s381 = scalar_lea.hbm %s3, %s380
          %s383 = sshll.u32 %s367, 4
          %s384 = int_to_ptr.vmem [resolvable:$true] %s383
          %386 = dma.vmem_to_hbm [thread:$0]  %s384, 128, %s381, %s364
        $region48: #{tpu_custom_call.1} parent=31 // pred_fallthru
          _
        // Predicated region
        $region49: #{tpu_custom_call.1} parent=31 // pred_check
          %p387 = pneg %p183
        $region50: #{tpu_custom_call.1} parent=31 // pred_check_branch
          %389 = sbr.rel (%p387) target = $region52
        $region51: #{tpu_custom_call.1} parent=31 // pred_region
          %s391 = ssub.s32 128, 128
          %392 = vsyncadd %s369, %s391
          %s393 = sadd.s32 %s34, %s33
          %s394 = smul.addr %s393, 128
          %s395 = scalar_lea.hbm %s4, %s394
          %s397 = sshll.u32 %s372, 4
          %s398 = int_to_ptr.vmem [resolvable:$true] %s397
          %400 = dma.vmem_to_hbm [thread:$0]  %s398, 128, %s395, %s369
        $region52: #{tpu_custom_call.1} parent=31 // pred_fallthru
          _
      $region32: #{tpu_custom_call.1} parent=5 // pred_fallthru
        _
      %p401 = scmp.le.s32.totalorder 2, %s23
      // Predicated region
      $region53: #{tpu_custom_call.1} parent=5 // pred_check
        %p402 = pneg %p401
      $region54: #{tpu_custom_call.1} parent=5 // pred_check_branch
        %404 = sbr.rel (%p402) target = $region56
      $region55: #{tpu_custom_call.1} parent=5 // pred_region
        %s405 = ssub.s32 %s23, 2
        // Predicated region
        $region57: #{tpu_custom_call.1} parent=55 // pred_check
          %p406 = pneg %p161
        $region58: #{tpu_custom_call.1} parent=55 // pred_check_branch
          %408 = sbr.rel (%p406) target = $region60
        $region59: #{tpu_custom_call.1} parent=55 // pred_region
          %s409 = sand.u32 %s146, 1
          %s410 = scalar_lea.sflag [#allocation4], %s409
          %s411 = sand.u32 %s146, 1
          %s412 = smul.addr %s411, 8
          %s413 = scalar_lea.vmem [#allocation7], %s412
          %414 = dma.done %s410, 128
        $region60: #{tpu_custom_call.1} parent=55 // pred_fallthru
          _
        // Predicated region
        $region61: #{tpu_custom_call.1} parent=55 // pred_check
          %p415 = pneg %p189
        $region62: #{tpu_custom_call.1} parent=55 // pred_check_branch
          %417 = sbr.rel (%p415) target = $region64
        $region63: #{tpu_custom_call.1} parent=55 // pred_region
          %s418 = sand.u32 %s174, 1
          %s419 = scalar_lea.sflag [#allocation9], %s418
          %s420 = sand.u32 %s174, 1
          %s421 = smul.addr %s420, 8
          %s422 = scalar_lea.vmem [#allocation8], %s421
          %423 = dma.done %s419, 128
        $region64: #{tpu_custom_call.1} parent=55 // pred_fallthru
          _
      $region56: #{tpu_custom_call.1} parent=5 // pred_fallthru
        _
    $region6: #{tpu_custom_call.1} parent=1 // loop_footer
      %s27 = sadd.s32 1, %s23
    $region7: #{tpu_custom_call.1} parent=1 // loop_footer_branch
      %22 = sbr.rel target = $region3
    $region8: #{tpu_custom_call.1} parent=1 // loop_exit
      _
    %424 = vsyncpa [#allocation3], 1
    %s425 = scalar_lea.sflag [#allocation3], 1
    %426 = vsyncpa %s425, 1
    %427 = vsyncpa [#allocation6], 1
    %s428 = scalar_lea.sflag [#allocation6], 1
    %429 = vsyncpa %s428, 1
    %430 = vsyncpa [#allocation4], 1
    %s431 = scalar_lea.sflag [#allocation4], 1
    %432 = vsyncpa %s431, 1
    %433 = vsyncpa [#allocation9], 1
    %s434 = scalar_lea.sflag [#allocation9], 1
    %435 = vsyncpa %s434, 1

</llo_original>
